<compile_context>
chip_gen: v7x
topology: tpu7x:2x2x1
jax: 0.10.0
libtpu: 0.0.40
codegen_flags: <defaults>
</compile_context>

<pallas_src>
import functools

import jax
import jax.numpy as jnp
from jax import lax
from jax.experimental import pallas as pl
from jax.experimental.pallas import tpu as pltpu

LANES = 128
NCORES = 2                              # shards across the 2 TCs on v7x; cheap serial loop on v5e/v6e
TARGET_TILE_BYTES = 4 * 1024 * 1024     # ~4 MiB of HBM per input per grid step
VMEM_LIMIT_BYTES = 32 * 1024 * 1024     # 2 inputs x 2 bufs x 4 MiB = 16 MiB + headroom (fits v5e/v6e/v7x)


def _round_up(a, b):
    return ((a + b - 1) // b) * b


def _mse_sum_kernel(x_ref, y_ref, o_ref, acc_ref, *, rows_total):
    """Per-core partial sum of (x - y)^2 over a lane-dense (rows, 128) slab."""
    c = pl.program_id(0)
    i = pl.program_id(1)
    steps = pl.num_programs(1)
    tm = x_ref.shape[0]

    @pl.when(i == 0)
    def _():
        acc_ref[...] = jnp.zeros_like(acc_ref)

    d = x_ref[...].astype(jnp.float32) - y_ref[...].astype(jnp.float32)
    sq = d * d

    # Mask rows past the true end of the data: the tail of the last (partial)
    # block and any clamped/duplicated blocks may hold garbage in VMEM.
    block = c * steps + i
    row = block * tm + lax.broadcasted_iota(jnp.int32, (tm, LANES), 0)
    sq = jnp.where(row < rows_total, sq, 0.0)

    # Fold the tile into a vreg-sized accumulator via leading-axis adds
    # (pure VPU work; no cross-lane/sublane shuffles in the hot loop).
    acc_ref[...] += jnp.sum(sq.reshape(tm // 8, 8, LANES), axis=0)

    @pl.when(i == steps - 1)
    def _():
        # Sublane reduce only; the cross-lane reduce happens in the JAX epilogue.
        o_ref[...] = jnp.sum(acc_ref[...], axis=0, keepdims=True)


@jax.jit
def content_loss(x, target, weight):
    assert x.shape == target.shape, "input/target shape mismatch"
    n = x.size
    itemsize = jnp.dtype(x.dtype).itemsize
    sub = max(8, 32 // itemsize)          # dtype-aware sublane packing: 8 f32 / 16 bf16 / 32 int8

    # Lane-dense slab: (rows, 128). Pad only to the lane width (plus a minimum
    # of one packed row-tile); typical activation sizes are already 128-aligned
    # and take the copy-free reshape path.
    n_pad = max(_round_up(n, LANES), sub * LANES)
    xf = x.reshape(-1)
    tf_ = target.reshape(-1)
    if n_pad != n:
        # TODO(synk): lane-tail masking in-kernel would avoid this padded copy
        # for element counts that are not a multiple of 128.
        xf = jnp.pad(xf, (0, n_pad - n))
        tf_ = jnp.pad(tf_, (0, n_pad - n))
    rows = n_pad // LANES
    x2 = xf.reshape(rows, LANES)
    t2 = tf_.reshape(rows, LANES)

    # Byte-budgeted row tile: ~TARGET_TILE_BYTES per input per grid step,
    # rounded to the dtype's sublane packing, never larger than the data.
    tm_cap = max(sub, (TARGET_TILE_BYTES // (LANES * itemsize)) // sub * sub)
    tm = min(tm_cap, max(sub, _round_up(pl.cdiv(rows, NCORES), sub)))
    nblocks = pl.cdiv(rows, tm)           # real blocks (last may be partial -> masked in-kernel)
    steps = pl.cdiv(nblocks, NCORES)
    last_block = nblocks - 1

    def in_map(c, i):
        # Clamp so trailing grid points never request a block starting past the
        # array; their (duplicate) contribution is masked to zero in-kernel.
        return (jnp.minimum(c * steps + i, last_block), 0)

    out = pl.pallas_call(
        functools.partial(_mse_sum_kernel, rows_total=rows),
        out_shape=jax.ShapeDtypeStruct((1, NCORES * LANES), jnp.float32),
        grid_spec=pltpu.PrefetchScalarGridSpec(
            num_scalar_prefetch=0,
            grid=(NCORES, steps),
            in_specs=[
                pl.BlockSpec((tm, LANES), in_map),
                pl.BlockSpec((tm, LANES), in_map),
            ],
            # Each core owns its own lane-dense (1, 128) output block.
            out_specs=pl.BlockSpec((1, LANES), lambda c, i: (0, c)),
            scratch_shapes=[pltpu.VMEM((8, LANES), jnp.float32)],
        ),
        compiler_params=pltpu.CompilerParams(
            dimension_semantics=("parallel", "arbitrary"),
            vmem_limit_bytes=VMEM_LIMIT_BYTES,
        ),
    )(x2, t2)

    # Epilogue glue: combine per-core / per-lane partials, mean, weight scaling.
    ssq = jnp.sum(out)
    w = jnp.asarray(weight, dtype=jnp.float32)
    return w * ssq / jnp.float32(n)


if __name__ == "__main__":
    key = jax.random.PRNGKey(0)
    k1, k2 = jax.random.split(key)
    # Small shapes consistent with NCHW conv activations.
    x = jax.random.normal(k1, (2, 4, 16, 16), dtype=jnp.float32)
    target = jax.random.normal(k2, (2, 4, 16, 16), dtype=jnp.float32)
    weight = 1000.0  # deterministic "parameter" from __init__(weight)

    loss = content_loss(x, target, weight)
    jax.block_until_ready(loss)

    # Pure-JAX reference check.
    ref = weight * jnp.mean((x - target) ** 2)
    assert jnp.allclose(loss, ref, rtol=1e-5, atol=1e-5), (loss, ref)

    print("KERNEL_OK")
</pallas_src>

<mosaic_0001>
module attributes {stable_mosaic.version = 11 : i64} {
  func.func @_mse_sum_kernel(%arg0: i32, %arg1: i32, %arg2: memref<8x128xf32, #tpu.memory_space<vmem>>, %arg3: memref<8x128xf32, #tpu.memory_space<vmem>>, %arg4: memref<1x128xf32, #tpu.memory_space<vmem>>, %arg5: memref<8x128xf32, #tpu.memory_space<vmem>>) attributes {dimension_semantics = [#tpu.dimension_semantics<parallel>, #tpu.dimension_semantics<arbitrary>], iteration_bounds = array<i64: 2, 1>, scalar_prefetch = 0 : i64, scratch_operands = 1 : i64, tpu.core_type = #tpu.core_type<tc>, window_params = [{transform_indices = @transform_0, window_bounds = array<i64: 8, 128>}, {transform_indices = @transform_1, window_bounds = array<i64: 8, 128>}, {transform_indices = @transform_2, window_bounds = array<i64: 1, 128>}]} {
    %c0_i32 = arith.constant 0 : i32
    %0 = arith.cmpi eq, %arg1, %c0_i32 : i32
    %1 = arith.extui %0 : i1 to i32
    %c0_i32_0 = arith.constant 0 : i32
    %2 = arith.cmpi ne, %1, %c0_i32_0 : i32
    scf.if %2 {
      %cst_11 = arith.constant 0.000000e+00 : f32
      %25 = vector.broadcast %cst_11 : f32 to vector<8x128xf32>
      %c0_12 = arith.constant 0 : index
      %c0_13 = arith.constant 0 : index
      %26 = vector.load %arg5[%c0_12, %c0_13] : memref<8x128xf32, #tpu.memory_space<vmem>>, vector<8x128xf32>
      tpu.vector_store %arg5[%c0_12, %c0_13], %25 {strides = array<i32>} : memref<8x128xf32, #tpu.memory_space<vmem>>, vector<8x128xf32>,
    } else {
    }
    %c0 = arith.constant 0 : index
    %c0_1 = arith.constant 0 : index
    %3 = vector.load %arg2[%c0, %c0_1] : memref<8x128xf32, #tpu.memory_space<vmem>>, vector<8x128xf32>
    %c0_2 = arith.constant 0 : index
    %c0_3 = arith.constant 0 : index
    %4 = vector.load %arg3[%c0_2, %c0_3] : memref<8x128xf32, #tpu.memory_space<vmem>>, vector<8x128xf32>
    %5 = arith.subf %3, %4 : vector<8x128xf32>
    %6 = arith.mulf %5, %5 : vector<8x128xf32>
    %c1_i32 = arith.constant 1 : i32
    %7 = arith.muli %arg0, %c1_i32 : i32
    %8 = arith.addi %7, %arg1 : i32
    %c8_i32 = arith.constant 8 : i32
    %9 = arith.muli %8, %c8_i32 : i32
    %10 = tpu.iota {dimensions = array<i32: 0>} : vector<8x128xi32>
    %11 = vector.broadcast %9 : i32 to vector<8x128xi32>
    %12 = arith.addi %11, %10 : vector<8x128xi32>
    %c16_i32 = arith.constant 16 : i32
    %13 = vector.broadcast %c16_i32 : i32 to vector<8x128xi32>
    %14 = arith.cmpi slt, %12, %13 : vector<8x128xi32>
    %cst = arith.constant 0.000000e+00 : f32
    %15 = vector.broadcast %cst : f32 to vector<8x128xf32>
    %16 = arith.select %14, %6, %15 : vector<8x128xi1>, vector<8x128xf32>
    %c0_4 = arith.constant 0 : index
    %c0_5 = arith.constant 0 : index
    %17 = vector.load %arg5[%c0_4, %c0_5] : memref<8x128xf32, #tpu.memory_space<vmem>>, vector<8x128xf32>
    %18 = vector.shape_cast %16 : vector<8x128xf32> to vector<1x8x128xf32>
    %cst_6 = arith.constant dense<0.000000e+00> : vector<8x128xf32>
    %19 = vector.multi_reduction <add>, %18, %cst_6 [0] : vector<1x8x128xf32> to vector<8x128xf32>
    %20 = arith.addf %17, %19 : vector<8x128xf32>
    %c0_7 = arith.constant 0 : index
    %c0_8 = arith.constant 0 : index
    %21 = vector.load %arg5[%c0_7, %c0_8] : memref<8x128xf32, #tpu.memory_space<vmem>>, vector<8x128xf32>
    tpu.vector_store %arg5[%c0_7, %c0_8], %20 {strides = array<i32>} : memref<8x128xf32, #tpu.memory_space<vmem>>, vector<8x128xf32>,
    %c0_i32_9 = arith.constant 0 : i32
    %22 = arith.cmpi eq, %arg1, %c0_i32_9 : i32
    %23 = arith.extui %22 : i1 to i32
    %c0_i32_10 = arith.constant 0 : i32
    %24 = arith.cmpi ne, %23, %c0_i32_10 : i32
    scf.if %24 {
      %c0_11 = arith.constant 0 : index
      %c0_12 = arith.constant 0 : index
      %25 = vector.load %arg5[%c0_11, %c0_12] : memref<8x128xf32, #tpu.memory_space<vmem>>, vector<8x128xf32>
      %cst_13 = arith.constant dense<0.000000e+00> : vector<128xf32>
      %26 = vector.multi_reduction <add>, %25, %cst_13 [0] : vector<8x128xf32> to vector<128xf32>
      %27 = vector.shape_cast %26 : vector<128xf32> to vector<1x128xf32>
      %c0_14 = arith.constant 0 : index
      %c0_15 = arith.constant 0 : index
      %28 = vector.load %arg4[%c0_14, %c0_15] : memref<1x128xf32, #tpu.memory_space<vmem>>, vector<1x128xf32>
      tpu.vector_store %arg4[%c0_14, %c0_15], %27 {strides = array<i32>} : memref<1x128xf32, #tpu.memory_space<vmem>>, vector<1x128xf32>,
    } else {
    }
    return
  }
  func.func @transform_0(%arg0: i32, %arg1: i32) -> (i32, i32) {
    %c1_i32 = arith.constant 1 : i32
    %0 = arith.muli %arg0, %c1_i32 : i32
    %1 = arith.addi %0, %arg1 : i32
    %c1_i32_0 = arith.constant 1 : i32
    %2 = arith.minsi %1, %c1_i32_0 : i32
    %c0_i32 = arith.constant 0 : i32
    %c0_i32_1 = arith.constant 0 : i32
    return %2, %c0_i32 : i32, i32
  }
  func.func @transform_1(%arg0: i32, %arg1: i32) -> (i32, i32) {
    %c1_i32 = arith.constant 1 : i32
    %0 = arith.muli %arg0, %c1_i32 : i32
    %1 = arith.addi %0, %arg1 : i32
    %c1_i32_0 = arith.constant 1 : i32
    %2 = arith.minsi %1, %c1_i32_0 : i32
    %c0_i32 = arith.constant 0 : i32
    %c0_i32_1 = arith.constant 0 : i32
    return %2, %c0_i32 : i32, i32
  }
  func.func @transform_2(%arg0: i32, %arg1: i32) -> (i32, i32) {
    %c0_i32 = arith.constant 0 : i32
    %c0_i32_0 = arith.constant 0 : i32
    return %c0_i32, %arg0 : i32, i32
  }
}

</mosaic_0001>

<llo_original>
// kernel: content_loss.1
$region0: #{content_loss.1}
  #allocation0 [shape = 'u32[]', space=smem, size = 0x4, offset = 0x4, fixed_abs, tag = 'smem constant byte address 0x4 - core index']
  #allocation1 [shape = 'u32[144,128]{1,0:T(1,128)}', space=vmem, size = 0x12000, scoped, tag = 'internal scratch']
  #allocation2 [shape = 'f32[8,128]{1,0:T(8,128)}', space=vmem, size = 0x1000, scoped, tag = 'scratch operand']
  %s0 = inlined_call_operand.vmem [shape: f32[16,128], index: 0, kind: input, shape index: {}]
  %s1 = inlined_call_operand.vmem [shape: f32[16,128], index: 1, kind: input, shape index: {}]
  %s2 = inlined_call_operand.vmem [shape: f32[1,256], index: 2, kind: output, shape index: {}]
  %s3 = sld [smem:[#allocation0]]
  $region49: #{content_loss.1} parent=0
    _
  %s5 = ssub.s32 1, %s3
  %s6 = scalar_select 0, %s5, %s3
  loop: start=0, step=1, limit=4
  $region2: #{content_loss.1} parent=0 // loop_pre_header
    _
  $region3: #{content_loss.1} parent=0 // loop_header
    %s8 = sphi 0, %s12
    %p9 = scmp.ge.s32.totalorder %s8, 4
    %s15 = sphi 0, %s27
    %s16 = sphi 0, %s23
    %s17 = sphi 0, %s15
    %s18 = sphi 0, %s16
    %s19 = sphi 0, %s17
    %s20 = sphi 0, %s18
    %s36 = sphi 0, %s38
    %s39 = sphi 0, %s36
    %s40 = sphi 0, %s39
    %s56 = sphi 0, %s40
    %s68 = sphi 0, %s70
    %s71 = sphi 0, %s68
    %s72 = sphi 0, %s71
    %s88 = sphi 0, %s72
    %s94 = sphi 0, %s96
    %s97 = sphi 0, %s94
    %s98 = sphi 0, %s97
    %s114 = sphi 0, %s98
  $region4: #{content_loss.1} parent=0 // loop_header_branch
    %11 = sbr.rel (%p9) target = $region8
  $region5: #{content_loss.1} parent=0 // loop_body
    %s13 = ssub.s32 %s8, 1
    %s14 = ssub.s32 %s8, 2
    %s21 = sadd.s32 1, %s16
    %p22 = scmp.ge.s32.totalorder %s21, 1
    %s23 = scalar_select %p22, 0, %s21
    %s24 = sadd.s32 1, %s15
    %s25 = scalar_select %p22, %s24, %s15
    %p26 = scmp.ge.s32.totalorder %s25, 2
    %s27 = scalar_select %p26, 0, %s25
    %s28 = sadd.s32 %s15, %s16
    %p29 = scmp.lt.s32.totalorder %s28, 1
    %s30 = scalar_select %p29, %s28, 1
    %s31 = sadd.s32 %s27, %s23
    %p32 = scmp.lt.s32.totalorder %s31, 1
    %s33 = scalar_select %p32, %s31, 1
    %s34 = ssub.s32 %s30, %s33
    %p35 = scmp.eq.s32.totalorder %s34, 0
    %s37 = sadd.s32 %s36, 1
    %s38 = scalar_select %p35, %s36, %s37
    %p41 = pneg %p35
    %p42 = scmp.eq.s32.totalorder %s8, 1
    %p43 = por %p41, %p42
    %p44 = scmp.ne.s32.totalorder %s36, %s39
    %p45 = scmp.eq.s32.totalorder %s8, 0
    %p46 = por %p44, %p45
    %p47 = scmp.ne.s32.totalorder %s36, %s39
    %p48 = scmp.eq.s32.totalorder %s13, 1
    %p49 = por %p47, %p48
    %p50 = scmp.ne.s32.totalorder %s39, %s40
    %p51 = scmp.eq.s32.totalorder %s13, 0
    %p52 = por %p50, %p51
    %p53 = scmp.ne.s32.totalorder %s39, %s40
    %p54 = scmp.eq.s32.totalorder %s14, 1
    %p55 = por %p53, %p54
    %p57 = scmp.ne.s32.totalorder %s40, %s56
    %p58 = scmp.eq.s32.totalorder %s14, 0
    %p59 = por %p57, %p58
    %s60 = sadd.s32 %s15, %s16
    %p61 = scmp.lt.s32.totalorder %s60, 1
    %s62 = scalar_select %p61, %s60, 1
    %s63 = sadd.s32 %s27, %s23
    %p64 = scmp.lt.s32.totalorder %s63, 1
    %s65 = scalar_select %p64, %s63, 1
    %s66 = ssub.s32 %s62, %s65
    %p67 = scmp.eq.s32.totalorder %s66, 0
    %s69 = sadd.s32 %s68, 1
    %s70 = scalar_select %p67, %s68, %s69
    %p73 = pneg %p67
    %p74 = scmp.eq.s32.totalorder %s8, 1
    %p75 = por %p73, %p74
    %p76 = scmp.ne.s32.totalorder %s68, %s71
    %p77 = scmp.eq.s32.totalorder %s8, 0
    %p78 = por %p76, %p77
    %p79 = scmp.ne.s32.totalorder %s68, %s71
    %p80 = scmp.eq.s32.totalorder %s13, 1
    %p81 = por %p79, %p80
    %p82 = scmp.ne.s32.totalorder %s71, %s72
    %p83 = scmp.eq.s32.totalorder %s13, 0
    %p84 = por %p82, %p83
    %p85 = scmp.ne.s32.totalorder %s71, %s72
    %p86 = scmp.eq.s32.totalorder %s14, 1
    %p87 = por %p85, %p86
    %p89 = scmp.ne.s32.totalorder %s72, %s88
    %p90 = scmp.eq.s32.totalorder %s14, 0
    %p91 = por %p89, %p90
    %s92 = ssub.s32 %s15, %s27
    %p93 = scmp.eq.s32.totalorder %s92, 0
    %s95 = sadd.s32 %s94, 1
    %s96 = scalar_select %p93, %s94, %s95
    %p99 = pneg %p93
    %p100 = scmp.eq.s32.totalorder %s8, 1
    %p101 = por %p99, %p100
    %p102 = scmp.ne.s32.totalorder %s94, %s97
    %p103 = scmp.eq.s32.totalorder %s8, 0
    %p104 = por %p102, %p103
    %p105 = scmp.ne.s32.totalorder %s94, %s97
    %p106 = scmp.eq.s32.totalorder %s13, 1
    %p107 = por %p105, %p106
    %p108 = scmp.ne.s32.totalorder %s97, %s98
    %p109 = scmp.eq.s32.totalorder %s13, 0
    %p110 = por %p108, %p109
    %p111 = scmp.ne.s32.totalorder %s97, %s98
    %p112 = scmp.eq.s32.totalorder %s14, 1
    %p113 = por %p111, %p112
    %p115 = scmp.ne.s32.totalorder %s98, %s114
    %p116 = scmp.eq.s32.totalorder %s14, 0
    %p117 = por %p115, %p116
    %p118 = scmp.le.s32.totalorder 1, %s8
    %p119 = scmp.lt.s32.totalorder %s8, 3
    %p120 = pnand %p118, %p119
    %p121 = pneg %p120
    // Predicated region
    $region9: #{content_loss.1} parent=5 // pred_check
      _
    $region10: #{content_loss.1} parent=5 // pred_check_branch
      %123 = sbr.rel (%p120) target = $region12
    $region11: #{content_loss.1} parent=5 // pred_region
      %s124 = ssub.s32 %s8, 1
    $region12: #{content_loss.1} parent=5 // pred_fallthru
      _
    %p125 = scmp.lt.s32.totalorder %s8, 2
    // Predicated region
    $region13: #{content_loss.1} parent=5 // pred_check
      %p126 = pneg %p125
    $region14: #{content_loss.1} parent=5 // pred_check_branch
      %128 = sbr.rel (%p126) target = $region16
    $region15: #{content_loss.1} parent=5 // pred_region
      // Predicated region
      $region17: #{content_loss.1} parent=15 // pred_check
        %p129 = pneg %p46
      $region18: #{content_loss.1} parent=15 // pred_check_branch
        %131 = sbr.rel (%p129) target = $region20
      $region19: #{content_loss.1} parent=15 // pred_region
        %s132 = sadd.s32 %s15, %s16
        %p133 = scmp.lt.s32.totalorder %s132, 1
        %s134 = scalar_select %p133, %s132, 1
        %p135 = scmp.lt.s32.totalorder %s134, 1
        %s136 = scalar_select %p135, %s134, 1
        %s137 = smul.addr %s136, 8
        %s138 = scalar_lea.vmem %s0, %s137
        %s139 = sadd.s32 %s15, %s16
        %p140 = scmp.lt.s32.totalorder %s139, 1
        %s141 = scalar_select %p140, %s139, 1
      $region20: #{content_loss.1} parent=15 // pred_fallthru
        _
      // Predicated region
      $region21: #{content_loss.1} parent=15 // pred_check
        %p142 = pneg %p78
      $region22: #{content_loss.1} parent=15 // pred_check_branch
        %144 = sbr.rel (%p142) target = $region24
      $region23: #{content_loss.1} parent=15 // pred_region
        %s145 = sadd.s32 %s15, %s16
        %p146 = scmp.lt.s32.totalorder %s145, 1
        %s147 = scalar_select %p146, %s145, 1
        %p148 = scmp.lt.s32.totalorder %s147, 1
        %s149 = scalar_select %p148, %s147, 1
        %s150 = smul.addr %s149, 8
        %s151 = scalar_lea.vmem %s1, %s150
        %s152 = sadd.s32 %s15, %s16
        %p153 = scmp.lt.s32.totalorder %s152, 1
        %s154 = scalar_select %p153, %s152, 1
      $region24: #{content_loss.1} parent=15 // pred_fallthru
        _
    $region16: #{content_loss.1} parent=5 // pred_fallthru
      _
    %p155 = scmp.le.s32.totalorder 1, %s8
    %p156 = scmp.lt.s32.totalorder %s8, 3
    %p157 = pnand %p155, %p156
    %p158 = pneg %p157
    // Predicated region
    $region25: #{content_loss.1} parent=5 // pred_check
      _
    $region26: #{content_loss.1} parent=5 // pred_check_branch
      %160 = sbr.rel (%p157) target = $region28
    $region27: #{content_loss.1} parent=5 // pred_region
      %s161 = ssub.s32 %s8, 1
      %s162 = sadd.s32 %s17, %s18
      %p163 = scmp.lt.s32.totalorder %s162, 1
      %s164 = scalar_select %p163, %s162, 1
      %p165 = scmp.lt.s32.totalorder %s164, 1
      %s166 = scalar_select %p165, %s164, 1
      %s167 = smul.addr %s166, 8
      %s168 = scalar_lea.vmem %s0, %s167
      %p169 = pneg %p52
      %p170 = pneg %p49
      %s171 = sadd.s32 %s17, %s18
      %p172 = scmp.lt.s32.totalorder %s171, 1
      %s173 = scalar_select %p172, %s171, 1
      %p174 = scmp.lt.s32.totalorder %s173, 1
      %s175 = scalar_select %p174, %s173, 1
      %s176 = smul.addr %s175, 8
      %s177 = scalar_lea.vmem %s1, %s176
      %p178 = pneg %p84
      %p179 = pneg %p81
      %p180 = pneg %p110
      %p181 = pneg %p107
      %p182 = scmp.lt.s32.totalorder %s17, 1
      %s183 = scalar_select %p182, %s17, 1
      %s184 = scalar_lea.vmem %s2, %s183
      %s185 = sadd.s32 %s17, %s18
      %p186 = scmp.lt.s32.totalorder %s185, 1
      %s187 = scalar_select %p186, %s185, 1
      %p188 = scmp.lt.s32.totalorder %s187, 1
      %s189 = scalar_select %p188, %s187, 1
      %s190 = smul.addr %s189, 8
      %s191 = scalar_lea.vmem %s0, %s190
      %s192 = sadd.s32 %s17, %s18
      %p193 = scmp.lt.s32.totalorder %s192, 1
      %s194 = scalar_select %p193, %s192, 1
      %s195 = sadd.s32 %s17, %s18
      %p196 = scmp.lt.s32.totalorder %s195, 1
      %s197 = scalar_select %p196, %s195, 1
      %p198 = scmp.lt.s32.totalorder %s197, 1
      %s199 = scalar_select %p198, %s197, 1
      %s200 = smul.addr %s199, 8
      %s201 = scalar_lea.vmem %s1, %s200
      %s202 = sadd.s32 %s17, %s18
      %p203 = scmp.lt.s32.totalorder %s202, 1
      %s204 = scalar_select %p203, %s202, 1
      %p205 = scmp.lt.s32.totalorder %s17, 1
      %s206 = scalar_select %p205, %s17, 1
      %s207 = scalar_lea.vmem %s2, %s206
      %p208 = scmp.eq.s32.totalorder %s18, 0
      // Predicated region
      $region29: #{content_loss.1} parent=27 // pred_check
        %p209 = pneg %p208
      $region30: #{content_loss.1} parent=27 // pred_check_branch
        %211 = sbr.rel (%p209) target = $region32
      $region31: #{content_loss.1} parent=27 // pred_region
        %212 = vst [vmem:[#allocation2] sm:$0xff] 0.0
      $region32: #{content_loss.1} parent=27 // pred_fallthru
        _
      %v213 = vld [vmem:[%s191] sm:$0xff]
      %v214 = vld [vmem:[%s201] sm:$0xff]
      %v215 = vsub.f32 %v213, %v214
      %v216 = vmul.f32 %v215, %v215
      %s217 = sadd.s32 %s17, %s18
      %s218 = smul.u32 %s217, 8
      %v219 = vlaneseq
      %v220 = vshrl.u32 %v219, 7
      %v221 = vstv %s218
      %v222 = vadd.s32 %v221, %v220
      %vm223 = vcmp.lt.s32.totalorder %v222, 16
      %v224 = vsel %vm223, %v216, 0.0
      %v225 = vld [vmem:[#allocation2] sm:$0xff]
      %v226 = vadd.f32 %v224, 0.0
      %v227 = vadd.f32 %v225, %v226
      %228 = vst [vmem:[#allocation2] sm:$0xff] %v227
      // Predicated region
      $region33: #{content_loss.1} parent=27 // pred_check
        %p229 = pneg %p208
      $region34: #{content_loss.1} parent=27 // pred_check_branch
        %231 = sbr.rel (%p229) target = $region36
      $region35: #{content_loss.1} parent=27 // pred_region
        %v232 = vld [vmem:[#allocation2] sm:$0xff]
        %v233 = vrot.slane %v232, 4
        %v234 = vadd.f32 %v232, %v233
        %v235 = vrot.slane %v234, 2
        %v236 = vadd.f32 %v234, %v235
        %v237 = vrot.slane %v236, 1
        %v238 = vadd.f32 %v236, %v237
        %239 = vst [vmem:[%s207] sm:$0x1] %v238
      $region36: #{content_loss.1} parent=27 // pred_fallthru
        _
      %p240 = scmp.lt.s32.totalorder %s17, 1
      %s241 = scalar_select %p240, %s17, 1
      %s242 = scalar_lea.vmem %s2, %s241
      // Predicated region
      $region37: #{content_loss.1} parent=27 // pred_check
        %p243 = pneg %p107
      $region38: #{content_loss.1} parent=27 // pred_check_branch
        %245 = sbr.rel (%p243) target = $region40
      $region39: #{content_loss.1} parent=27 // pred_region
        _
      $region40: #{content_loss.1} parent=27 // pred_fallthru
        _
    $region28: #{content_loss.1} parent=5 // pred_fallthru
      _
    %p246 = scmp.le.s32.totalorder 2, %s8
    // Predicated region
    $region41: #{content_loss.1} parent=5 // pred_check
      %p247 = pneg %p246
    $region42: #{content_loss.1} parent=5 // pred_check_branch
      %249 = sbr.rel (%p247) target = $region44
    $region43: #{content_loss.1} parent=5 // pred_region
      %s250 = ssub.s32 %s8, 2
      // Predicated region
      $region45: #{content_loss.1} parent=43 // pred_check
        %p251 = pneg %p113
      $region46: #{content_loss.1} parent=43 // pred_check_branch
        %253 = sbr.rel (%p251) target = $region48
      $region47: #{content_loss.1} parent=43 // pred_region
        %p254 = scmp.lt.s32.totalorder %s19, 1
        %s255 = scalar_select %p254, %s19, 1
        %s256 = scalar_lea.vmem %s2, %s255
      $region48: #{content_loss.1} parent=43 // pred_fallthru
        _
    $region44: #{content_loss.1} parent=5 // pred_fallthru
      _
  $region6: #{content_loss.1} parent=0 // loop_footer
    %s12 = sadd.s32 1, %s8
  $region7: #{content_loss.1} parent=0 // loop_footer_branch
    %7 = sbr.rel target = $region3
  $region8: #{content_loss.1} parent=0 // loop_exit
    _

</llo_original>
